<compile_context>
chip_gen: v5e
topology: v5e:2x2
jax: 0.10.0
libtpu: 0.0.40
codegen_flags: <defaults>
</compile_context>

<pallas_src>
import jax
import jax.numpy as jnp
from jax.experimental import pallas as pl
from jax.experimental.pallas import tpu as pltpu


def _choose_tm(m, n_batch):
    """Pixels per block (lane tile).  Sized by VMEM budget so the kernel is
    HBM-bound instead of grid-step-overhead bound, while keeping >= 2 grid
    steps overall so v7x's two TensorCores both get work."""
    # 2 buffers * (3 in + 8 out) ch * 4 B * 65536 lanes ~= 5.8 MiB -> fits the
    # default scoped-VMEM limit on v5e / v6e / v7x with headroom.
    tm_max = 65536
    if m <= 128:
        return m                        # one tiny tile == full pixel extent
    if n_batch >= 2:
        tm = min(tm_max, m)             # batch axis already gives >= 2 steps
    else:
        tm = min(tm_max, -(-m // 2))    # split pixels so the grid has >= 2 steps
    return max(128, (tm // 128) * 128)  # lane-aligned, never exceeds m


def _fused_kernel(x_ref, w1_ref, b1_ref, w2_ref, b2_ref, o_ref):
    # x_ref : (3, TM)   input pixels; channels on sublanes, pixels lane-dense.
    # w1_ref: (8, 3)    b1_ref: (8, 1)
    # w2_ref: (8, 8)    b2_ref: (8, 1)   (already cropped to the 8 kept channels)
    # o_ref : (8, TM)
    x = x_ref[...]                                   # (3, TM)
    w1 = w1_ref[...]                                 # (8, 3)
    cin = x.shape[0]

    # conv1 (1x1, K=3): three broadcast FMAs on the VPU (too small for the MXU).
    acc = w1[:, 0:1] * x[0:1, :]
    for k in range(1, cin):
        acc = acc + w1[:, k:k + 1] * x[k:k + 1, :]
    v1 = acc + b1_ref[...]                           # (8,1) bias broadcast once
    # sigmoid via tanh: a single EUP push instead of exp + add + divide.
    v2 = 0.5 * jnp.tanh(0.5 * v1) + 0.5              # (8, TM)

    # conv2 (1x1, K=8): 8x8 contraction on the MXU at full f32 precision.
    v3 = jnp.dot(w2_ref[...], v2,
                 preferred_element_type=jnp.float32,
                 precision=jax.lax.Precision.HIGHEST) + b2_ref[...]
    v4 = 0.5 * jnp.tanh(0.5 * v3) + 0.5              # (8, TM)

    o_ref[...] = (v2 * v4).astype(o_ref.dtype)


def model_forward(x_nchw, w1, b1, w2, b2, out_dtype=jnp.float32):
    """x_nchw: (N, 3, H, W) f32 -> (N, 8, H+2, W+2).

    w1: (8, 3), b1: (8, 1), w2: (9, 8), b2: (9, 1)  (torch Conv2d weights with
    the 1x1 spatial kernel squeezed away)."""
    n, cin, h, w = x_nchw.shape
    hp, wp = h + 2, w + 2
    m = hp * wp

    # conv1's padding=1 is a zero spatial pad; with 1x1 kernels everything
    # downstream is pointwise per pixel.
    x_pad = jnp.pad(x_nchw, ((0, 0), (0, 0), (1, 1), (1, 1)))
    # Channels already lead inside each batch entry -> no transpose; this
    # flatten and the final reshape back to NCHW are metadata-only.
    x_flat = x_pad.reshape(n, cin, m)

    # Only the first 8 output channels of conv2 survive the crop/multiply.
    w2c = w2[:8, :]
    b2c = b2[:8, :]

    tm = _choose_tm(m, n)
    n_tiles = pl.cdiv(m, tm)

    out = pl.pallas_call(
        _fused_kernel,
        out_shape=jax.ShapeDtypeStruct((n, 8, m), out_dtype),
        grid_spec=pltpu.PrefetchScalarGridSpec(
            num_scalar_prefetch=0,
            grid=(n, n_tiles),
            in_specs=[
                pl.BlockSpec((pl.Squeezed(), cin, tm), lambda b, i: (b, 0, i)),
                pl.BlockSpec((8, cin), lambda b, i: (0, 0)),
                pl.BlockSpec((8, 1), lambda b, i: (0, 0)),
                pl.BlockSpec((8, 8), lambda b, i: (0, 0)),
                pl.BlockSpec((8, 1), lambda b, i: (0, 0)),
            ],
            out_specs=pl.BlockSpec((pl.Squeezed(), 8, tm),
                                   lambda b, i: (b, 0, i)),
        ),
        compiler_params=pltpu.CompilerParams(
            dimension_semantics=("parallel", "parallel")),
    )(x_flat, w1, b1, w2c, b2c)

    return out.reshape(n, 8, hp, wp)


model_forward_jit = jax.jit(model_forward)


def init_params(key):
    # Uniform +/- 1/sqrt(fan_in), mimicking torch Conv2d default init.
    k1, k2, k3, k4 = jax.random.split(key, 4)
    bound1 = 1.0 / jnp.sqrt(3.0)
    bound2 = 1.0 / jnp.sqrt(8.0)
    w1 = jax.random.uniform(k1, (8, 3), jnp.float32, -bound1, bound1)  # (Cout, Cin)
    b1 = jax.random.uniform(k2, (8, 1), jnp.float32, -bound1, bound1)
    w2 = jax.random.uniform(k3, (9, 8), jnp.float32, -bound2, bound2)
    b2 = jax.random.uniform(k4, (9, 1), jnp.float32, -bound2, bound2)
    return w1, b1, w2, b2


if __name__ == "__main__":
    key = jax.random.PRNGKey(0)
    kx, kp = jax.random.split(key)

    # Small shape consistent with the module (Cin must be 3).
    x = jax.random.normal(kx, (2, 3, 16, 16), dtype=jnp.float32)
    w1, b1, w2, b2 = init_params(kp)

    out = model_forward_jit(x, w1, b1, w2, b2)
    out = jax.block_until_ready(out)
    assert out.shape == (2, 8, 18, 18), out.shape

    # Pure-JAX reference of the same (center-crop, first-8-channels) semantics.
    hi = jax.lax.Precision.HIGHEST
    x_pad = jnp.pad(jnp.transpose(x, (0, 2, 3, 1)),
                    ((0, 0), (1, 1), (1, 1), (0, 0)))
    v2_ref = jax.nn.sigmoid(
        jnp.einsum('nhwc,oc->nhwo', x_pad, w1, precision=hi) + b1[:, 0])
    v4_ref = jax.nn.sigmoid(
        jnp.einsum('nhwc,oc->nhwo', v2_ref, w2, precision=hi) + b2[:, 0])
    v5_ref = jnp.transpose(v2_ref * v4_ref[..., :8], (0, 3, 1, 2))
    assert jnp.allclose(out, v5_ref, atol=1e-5, rtol=1e-5), float(
        jnp.max(jnp.abs(out - v5_ref)))

    print("KERNEL_OK")
</pallas_src>

<mosaic_0001>
module attributes {stable_mosaic.version = 11 : i64} {
  func.func @_fused_kernel(%arg0: i32, %arg1: i32, %arg2: memref<1x3x256xf32, #tpu.memory_space<vmem>>, %arg3: memref<8x3xf32, #tpu.memory_space<vmem>>, %arg4: memref<8x1xf32, #tpu.memory_space<vmem>>, %arg5: memref<8x8xf32, #tpu.memory_space<vmem>>, %arg6: memref<8x1xf32, #tpu.memory_space<vmem>>, %arg7: memref<1x8x256xf32, #tpu.memory_space<vmem>>) attributes {dimension_semantics = [#tpu.dimension_semantics<parallel>, #tpu.dimension_semantics<parallel>], iteration_bounds = array<i64: 2, 2>, scalar_prefetch = 0 : i64, scratch_operands = 0 : i64, tpu.core_type = #tpu.core_type<tc>, window_params = [{transform_indices = @transform_0, window_bounds = array<i64: 1, 3, 256>}, {pipeline_mode = #tpu.pipeline_mode<synchronous>, transform_indices = @transform_1, window_bounds = array<i64: 8, 3>}, {pipeline_mode = #tpu.pipeline_mode<synchronous>, transform_indices = @transform_2, window_bounds = array<i64: 8, 1>}, {pipeline_mode = #tpu.pipeline_mode<synchronous>, transform_indices = @transform_3, window_bounds = array<i64: 8, 8>}, {pipeline_mode = #tpu.pipeline_mode<synchronous>, transform_indices = @transform_4, window_bounds = array<i64: 8, 1>}, {transform_indices = @transform_5, window_bounds = array<i64: 1, 8, 256>}]} {
    %c0 = arith.constant 0 : index
    %c0_0 = arith.constant 0 : index
    %c0_1 = arith.constant 0 : index
    %0 = vector.load %arg2[%c0, %c0_0, %c0_1] : memref<1x3x256xf32, #tpu.memory_space<vmem>>, vector<1x3x256xf32>
    %1 = vector.shape_cast %0 : vector<1x3x256xf32> to vector<3x256xf32>
    %c0_2 = arith.constant 0 : index
    %c0_3 = arith.constant 0 : index
    %2 = vector.load %arg3[%c0_2, %c0_3] : memref<8x3xf32, #tpu.memory_space<vmem>>, vector<8x3xf32>
    %3 = vector.extract_strided_slice %2 {offsets = [0, 0], sizes = [8, 1], strides = [1, 1]} : vector<8x3xf32> to vector<8x1xf32>
    %4 = vector.extract_strided_slice %1 {offsets = [0, 0], sizes = [1, 256], strides = [1, 1]} : vector<3x256xf32> to vector<1x256xf32>
    %5 = vector.broadcast %3 : vector<8x1xf32> to vector<8x256xf32>
    %6 = vector.broadcast %4 : vector<1x256xf32> to vector<8x256xf32>
    %7 = arith.mulf %5, %6 : vector<8x256xf32>
    %8 = vector.extract_strided_slice %2 {offsets = [0, 1], sizes = [8, 1], strides = [1, 1]} : vector<8x3xf32> to vector<8x1xf32>
    %9 = vector.extract_strided_slice %1 {offsets = [1, 0], sizes = [1, 256], strides = [1, 1]} : vector<3x256xf32> to vector<1x256xf32>
    %10 = vector.broadcast %8 : vector<8x1xf32> to vector<8x256xf32>
    %11 = vector.broadcast %9 : vector<1x256xf32> to vector<8x256xf32>
    %12 = arith.mulf %10, %11 : vector<8x256xf32>
    %13 = arith.addf %7, %12 : vector<8x256xf32>
    %14 = vector.extract_strided_slice %2 {offsets = [0, 2], sizes = [8, 1], strides = [1, 1]} : vector<8x3xf32> to vector<8x1xf32>
    %15 = vector.extract_strided_slice %1 {offsets = [2, 0], sizes = [1, 256], strides = [1, 1]} : vector<3x256xf32> to vector<1x256xf32>
    %16 = vector.broadcast %14 : vector<8x1xf32> to vector<8x256xf32>
    %17 = vector.broadcast %15 : vector<1x256xf32> to vector<8x256xf32>
    %18 = arith.mulf %16, %17 : vector<8x256xf32>
    %19 = arith.addf %13, %18 : vector<8x256xf32>
    %c0_4 = arith.constant 0 : index
    %c0_5 = arith.constant 0 : index
    %20 = vector.load %arg4[%c0_4, %c0_5] : memref<8x1xf32, #tpu.memory_space<vmem>>, vector<8x1xf32>
    %21 = vector.broadcast %20 : vector<8x1xf32> to vector<8x256xf32>
    %22 = arith.addf %19, %21 : vector<8x256xf32>
    %cst = arith.constant 5.000000e-01 : f32
    %23 = vector.broadcast %cst : f32 to vector<8x256xf32>
    %24 = arith.mulf %23, %22 : vector<8x256xf32>
    %25 = math.tanh %24 : vector<8x256xf32>
    %cst_6 = arith.constant 5.000000e-01 : f32
    %26 = vector.broadcast %cst_6 : f32 to vector<8x256xf32>
    %27 = arith.mulf %26, %25 : vector<8x256xf32>
    %cst_7 = arith.constant 5.000000e-01 : f32
    %28 = vector.broadcast %cst_7 : f32 to vector<8x256xf32>
    %29 = arith.addf %27, %28 : vector<8x256xf32>
    %c0_8 = arith.constant 0 : index
    %c0_9 = arith.constant 0 : index
    %30 = vector.load %arg5[%c0_8, %c0_9] : memref<8x8xf32, #tpu.memory_space<vmem>>, vector<8x8xf32>
    %cst_10 = arith.constant dense<0.000000e+00> : vector<8x256xf32>
    %31 = tpu.matmul %30, %29, %cst_10 {dimension_numbers = #tpu.dot_dimension_numbers<[1], [0], [0], [1], [0, 0, 1, 1], [], []>, precision = #tpu.contract_precision<fp32>} : vector<8x8xf32>, vector<8x256xf32>, vector<8x256xf32> -> vector<8x256xf32>
    %c0_11 = arith.constant 0 : index
    %c0_12 = arith.constant 0 : index
    %32 = vector.load %arg6[%c0_11, %c0_12] : memref<8x1xf32, #tpu.memory_space<vmem>>, vector<8x1xf32>
    %33 = vector.broadcast %32 : vector<8x1xf32> to vector<8x256xf32>
    %34 = arith.addf %31, %33 : vector<8x256xf32>
    %cst_13 = arith.constant 5.000000e-01 : f32
    %35 = vector.broadcast %cst_13 : f32 to vector<8x256xf32>
    %36 = arith.mulf %35, %34 : vector<8x256xf32>
    %37 = math.tanh %36 : vector<8x256xf32>
    %cst_14 = arith.constant 5.000000e-01 : f32
    %38 = vector.broadcast %cst_14 : f32 to vector<8x256xf32>
    %39 = arith.mulf %38, %37 : vector<8x256xf32>
    %cst_15 = arith.constant 5.000000e-01 : f32
    %40 = vector.broadcast %cst_15 : f32 to vector<8x256xf32>
    %41 = arith.addf %39, %40 : vector<8x256xf32>
    %42 = arith.mulf %29, %41 : vector<8x256xf32>
    %c0_16 = arith.constant 0 : index
    %c0_17 = arith.constant 0 : index
    %c0_18 = arith.constant 0 : index
    %43 = vector.load %arg7[%c0_16, %c0_17, %c0_18] : memref<1x8x256xf32, #tpu.memory_space<vmem>>, vector<1x8x256xf32>
    %44 = vector.shape_cast %43 : vector<1x8x256xf32> to vector<8x256xf32>
    %45 = vector.shape_cast %42 : vector<8x256xf32> to vector<1x8x256xf32>
    tpu.vector_store %arg7[%c0_16, %c0_17, %c0_18], %45 {strides = array<i32>} : memref<1x8x256xf32, #tpu.memory_space<vmem>>, vector<1x8x256xf32>,
    return
  }
  func.func @transform_0(%arg0: i32, %arg1: i32) -> (i32, i32, i32) {
    %c0_i32 = arith.constant 0 : i32
    %c0_i32_0 = arith.constant 0 : i32
    return %arg0, %c0_i32, %arg1 : i32, i32, i32
  }
  func.func @transform_1(%arg0: i32, %arg1: i32) -> (i32, i32) {
    %c0_i32 = arith.constant 0 : i32
    %c0_i32_0 = arith.constant 0 : i32
    %c0_i32_1 = arith.constant 0 : i32
    return %c0_i32, %c0_i32_0 : i32, i32
  }
  func.func @transform_2(%arg0: i32, %arg1: i32) -> (i32, i32) {
    %c0_i32 = arith.constant 0 : i32
    %c0_i32_0 = arith.constant 0 : i32
    %c0_i32_1 = arith.constant 0 : i32
    return %c0_i32, %c0_i32_0 : i32, i32
  }
  func.func @transform_3(%arg0: i32, %arg1: i32) -> (i32, i32) {
    %c0_i32 = arith.constant 0 : i32
    %c0_i32_0 = arith.constant 0 : i32
    %c0_i32_1 = arith.constant 0 : i32
    return %c0_i32, %c0_i32_0 : i32, i32
  }
  func.func @transform_4(%arg0: i32, %arg1: i32) -> (i32, i32) {
    %c0_i32 = arith.constant 0 : i32
    %c0_i32_0 = arith.constant 0 : i32
    %c0_i32_1 = arith.constant 0 : i32
    return %c0_i32, %c0_i32_0 : i32, i32
  }
  func.func @transform_5(%arg0: i32, %arg1: i32) -> (i32, i32, i32) {
    %c0_i32 = arith.constant 0 : i32
    %c0_i32_0 = arith.constant 0 : i32
    return %arg0, %c0_i32, %arg1 : i32, i32, i32
  }
}

</mosaic_0001>

<llo_original>
// kernel: model_forward.1
$region0: #{model_forward.1}
  #allocation0 [shape = 'u32[]', space=smem, size = 0x4, offset = 0x4, fixed_abs, tag = 'smem constant byte address 0x4 - core index']
  #allocation1 [shape = 'u32[72,128]{1,0:T(1,128)}', space=vmem, size = 0x9000, scoped, tag = 'internal scratch']
  %s0 = inlined_call_operand.vmem [shape: f32[2,3,324], index: 0, kind: input, shape index: {}]
  %s1 = inlined_call_operand.vmem [shape: f32[8,3], index: 1, kind: input, shape index: {}]
  %s2 = inlined_call_operand.vmem [shape: f32[8,1], index: 2, kind: input, shape index: {}]
  %s3 = inlined_call_operand.vmem [shape: f32[8,8], index: 3, kind: input, shape index: {}]
  %s4 = inlined_call_operand.vmem [shape: f32[8,1], index: 4, kind: input, shape index: {}]
  %s5 = inlined_call_operand.vmem [shape: f32[2,8,324], index: 5, kind: output, shape index: {}]
  %s6 = sld [smem:[#allocation0]]
  $region115: #{model_forward.1} parent=0
    _
  %s8 = ssub.s32 1, %s6
  %s9 = scalar_select 0, %s8, %s6
  $region1: #{model_forward.1} parent=0
    #allocation2 [shape = 'u8[16384]{0}', space=vmem, size = 0x4000, scoped, tag = 'output window, operand 0']
    loop: start=0, step=1, limit=6
    $region2: #{model_forward.1} parent=1 // loop_pre_header
      _
    $region3: #{model_forward.1} parent=1 // loop_header
      %s11 = sphi 0, %s15
      %p12 = scmp.ge.s32.totalorder %s11, 6
      %s18 = sphi 0, %s30
      %s19 = sphi 0, %s26
      %s20 = sphi 0, %s18
      %s21 = sphi 0, %s19
      %s22 = sphi 0, %s20
      %s23 = sphi 0, %s21
      %s35 = sphi 0, %s37
      %s38 = sphi 0, %s35
      %s39 = sphi 0, %s38
      %s55 = sphi 0, %s39
      %s59 = sphi 0, %s59
      %s61 = sphi 0, %s59
      %s62 = sphi 0, %s61
      %s76 = sphi 0, %s62
      %s80 = sphi 0, %s80
      %s82 = sphi 0, %s80
      %s83 = sphi 0, %s82
      %s97 = sphi 0, %s83
      %s101 = sphi 0, %s101
      %s103 = sphi 0, %s101
      %s104 = sphi 0, %s103
      %s118 = sphi 0, %s104
      %s122 = sphi 0, %s122
      %s124 = sphi 0, %s122
      %s125 = sphi 0, %s124
      %s139 = sphi 0, %s125
      %s147 = sphi 0, %s149
      %s150 = sphi 0, %s147
      %s151 = sphi 0, %s150
      %s167 = sphi 0, %s151
    $region4: #{model_forward.1} parent=1 // loop_header_branch
      %14 = sbr.rel (%p12) target = $region8
    $region5: #{model_forward.1} parent=1 // loop_body
      %s16 = ssub.s32 %s11, 1
      %s17 = ssub.s32 %s11, 2
      %s24 = sadd.s32 1, %s19
      %p25 = scmp.ge.s32.totalorder %s24, 2
      %s26 = scalar_select %p25, 0, %s24
      %s27 = sadd.s32 1, %s18
      %s28 = scalar_select %p25, %s27, %s18
      %p29 = scmp.ge.s32.totalorder %s28, 2
      %s30 = scalar_select %p29, 0, %s28
      %s31 = ssub.s32 %s18, %s30
      %s32 = ssub.s32 %s19, %s26
      %s33 = sor.u32 %s31, %s32
      %p34 = scmp.eq.s32.totalorder %s33, 0
      %s36 = sadd.s32 %s35, 1
      %s37 = scalar_select %p34, %s35, %s36
      %p40 = pneg %p34
      %p41 = scmp.eq.s32.totalorder %s11, 3
      %p42 = por %p40, %p41
      %p43 = scmp.ne.s32.totalorder %s35, %s38
      %p44 = scmp.eq.s32.totalorder %s11, 0
      %p45 = por %p43, %p44
      %p46 = scmp.ne.s32.totalorder %s35, %s38
      %p47 = scmp.eq.s32.totalorder %s16, 3
      %p48 = por %p46, %p47
      %p49 = scmp.ne.s32.totalorder %s38, %s39
      %p50 = scmp.eq.s32.totalorder %s16, 0
      %p51 = por %p49, %p50
      %p52 = scmp.ne.s32.totalorder %s38, %s39
      %p53 = scmp.eq.s32.totalorder %s17, 3
      %p54 = por %p52, %p53
      %p56 = scmp.ne.s32.totalorder %s39, %s55
      %p57 = scmp.eq.s32.totalorder %s17, 0
      %p58 = por %p56, %p57
      %s60 = sadd.s32 %s59, 1
      %p63 = scmp.eq.s32.totalorder %s11, 3
      %p64 = scmp.ne.s32.totalorder %s59, %s61
      %p65 = scmp.eq.s32.totalorder %s11, 0
      %p66 = por %p64, %p65
      %p67 = scmp.ne.s32.totalorder %s59, %s61
      %p68 = scmp.eq.s32.totalorder %s16, 3
      %p69 = por %p67, %p68
      %p70 = scmp.ne.s32.totalorder %s61, %s62
      %p71 = scmp.eq.s32.totalorder %s16, 0
      %p72 = por %p70, %p71
      %p73 = scmp.ne.s32.totalorder %s61, %s62
      %p74 = scmp.eq.s32.totalorder %s17, 3
      %p75 = por %p73, %p74
      %p77 = scmp.ne.s32.totalorder %s62, %s76
      %p78 = scmp.eq.s32.totalorder %s17, 0
      %p79 = por %p77, %p78
      %s81 = sadd.s32 %s80, 1
      %p84 = scmp.eq.s32.totalorder %s11, 3
      %p85 = scmp.ne.s32.totalorder %s80, %s82
      %p86 = scmp.eq.s32.totalorder %s11, 0
      %p87 = por %p85, %p86
      %p88 = scmp.ne.s32.totalorder %s80, %s82
      %p89 = scmp.eq.s32.totalorder %s16, 3
      %p90 = por %p88, %p89
      %p91 = scmp.ne.s32.totalorder %s82, %s83
      %p92 = scmp.eq.s32.totalorder %s16, 0
      %p93 = por %p91, %p92
      %p94 = scmp.ne.s32.totalorder %s82, %s83
      %p95 = scmp.eq.s32.totalorder %s17, 3
      %p96 = por %p94, %p95
      %p98 = scmp.ne.s32.totalorder %s83, %s97
      %p99 = scmp.eq.s32.totalorder %s17, 0
      %p100 = por %p98, %p99
      %s102 = sadd.s32 %s101, 1
      %p105 = scmp.eq.s32.totalorder %s11, 3
      %p106 = scmp.ne.s32.totalorder %s101, %s103
      %p107 = scmp.eq.s32.totalorder %s11, 0
      %p108 = por %p106, %p107
      %p109 = scmp.ne.s32.totalorder %s101, %s103
      %p110 = scmp.eq.s32.totalorder %s16, 3
      %p111 = por %p109, %p110
      %p112 = scmp.ne.s32.totalorder %s103, %s104
      %p113 = scmp.eq.s32.totalorder %s16, 0
      %p114 = por %p112, %p113
      %p115 = scmp.ne.s32.totalorder %s103, %s104
      %p116 = scmp.eq.s32.totalorder %s17, 3
      %p117 = por %p115, %p116
      %p119 = scmp.ne.s32.totalorder %s104, %s118
      %p120 = scmp.eq.s32.totalorder %s17, 0
      %p121 = por %p119, %p120
      %s123 = sadd.s32 %s122, 1
      %p126 = scmp.eq.s32.totalorder %s11, 3
      %p127 = scmp.ne.s32.totalorder %s122, %s124
      %p128 = scmp.eq.s32.totalorder %s11, 0
      %p129 = por %p127, %p128
      %p130 = scmp.ne.s32.totalorder %s122, %s124
      %p131 = scmp.eq.s32.totalorder %s16, 3
      %p132 = por %p130, %p131
      %p133 = scmp.ne.s32.totalorder %s124, %s125
      %p134 = scmp.eq.s32.totalorder %s16, 0
      %p135 = por %p133, %p134
      %p136 = scmp.ne.s32.totalorder %s124, %s125
      %p137 = scmp.eq.s32.totalorder %s17, 3
      %p138 = por %p136, %p137
      %p140 = scmp.ne.s32.totalorder %s125, %s139
      %p141 = scmp.eq.s32.totalorder %s17, 0
      %p142 = por %p140, %p141
      %s143 = ssub.s32 %s18, %s30
      %s144 = ssub.s32 %s19, %s26
      %s145 = sor.u32 %s143, %s144
      %p146 = scmp.eq.s32.totalorder %s145, 0
      %s148 = sadd.s32 %s147, 1
      %s149 = scalar_select %p146, %s147, %s148
      %p152 = pneg %p146
      %p153 = scmp.eq.s32.totalorder %s11, 3
      %p154 = por %p152, %p153
      %p155 = scmp.ne.s32.totalorder %s147, %s150
      %p156 = scmp.eq.s32.totalorder %s11, 0
      %p157 = por %p155, %p156
      %p158 = scmp.ne.s32.totalorder %s147, %s150
      %p159 = scmp.eq.s32.totalorder %s16, 3
      %p160 = por %p158, %p159
      %p161 = scmp.ne.s32.totalorder %s150, %s151
      %p162 = scmp.eq.s32.totalorder %s16, 0
      %p163 = por %p161, %p162
      %p164 = scmp.ne.s32.totalorder %s150, %s151
      %p165 = scmp.eq.s32.totalorder %s17, 3
      %p166 = por %p164, %p165
      %p168 = scmp.ne.s32.totalorder %s151, %s167
      %p169 = scmp.eq.s32.totalorder %s17, 0
      %p170 = por %p168, %p169
      %p171 = scmp.le.s32.totalorder 1, %s11
      %p172 = scmp.lt.s32.totalorder %s11, 5
      %p173 = pnand %p171, %p172
      %p174 = pneg %p173
      // Predicated region
      $region9: #{model_forward.1} parent=5 // pred_check
        _
      $region10: #{model_forward.1} parent=5 // pred_check_branch
        %176 = sbr.rel (%p173) target = $region12
      $region11: #{model_forward.1} parent=5 // pred_region
        %s177 = ssub.s32 %s11, 1
        // Predicated region
        $region13: #{model_forward.1} parent=11 // pred_check
          %p178 = pneg %p72
        $region14: #{model_forward.1} parent=11 // pred_check_branch
          %180 = sbr.rel (%p178) target = $region16
        $region15: #{model_forward.1} parent=11 // pred_region
          _
        $region16: #{model_forward.1} parent=11 // pred_fallthru
          _
        // Predicated region
        $region17: #{model_forward.1} parent=11 // pred_check
          %p181 = pneg %p93
        $region18: #{model_forward.1} parent=11 // pred_check_branch
          %183 = sbr.rel (%p181) target = $region20
        $region19: #{model_forward.1} parent=11 // pred_region
          _
        $region20: #{model_forward.1} parent=11 // pred_fallthru
          _
        // Predicated region
        $region21: #{model_forward.1} parent=11 // pred_check
          %p184 = pneg %p114
        $region22: #{model_forward.1} parent=11 // pred_check_branch
          %186 = sbr.rel (%p184) target = $region24
        $region23: #{model_forward.1} parent=11 // pred_region
          _
        $region24: #{model_forward.1} parent=11 // pred_fallthru
          _
        // Predicated region
        $region25: #{model_forward.1} parent=11 // pred_check
          %p187 = pneg %p135
        $region26: #{model_forward.1} parent=11 // pred_check_branch
          %189 = sbr.rel (%p187) target = $region28
        $region27: #{model_forward.1} parent=11 // pred_region
          _
        $region28: #{model_forward.1} parent=11 // pred_fallthru
          _
      $region12: #{model_forward.1} parent=5 // pred_fallthru
        _
      %p190 = scmp.lt.s32.totalorder %s11, 4
      // Predicated region
      $region29: #{model_forward.1} parent=5 // pred_check
        %p191 = pneg %p190
      $region30: #{model_forward.1} parent=5 // pred_check_branch
        %193 = sbr.rel (%p191) target = $region32
      $region31: #{model_forward.1} parent=5 // pred_region
        // Predicated region
        $region33: #{model_forward.1} parent=31 // pred_check
          %p194 = pneg %p45
        $region34: #{model_forward.1} parent=31 // pred_check_branch
          %196 = sbr.rel (%p194) target = $region36
        $region35: #{model_forward.1} parent=31 // pred_region
          %s197 = smul.u32 2, %s19
          %s198 = ssub.s32 3, %s197
          %p199 = scmp.lt.s32.totalorder %s198, 2
          %s200 = scalar_select %p199, %s198, 2
          %s201 = smul.u32 4, %s200
          %p202 = scmp.lt.s32.totalorder %s18, 1
          %s203 = scalar_select %p202, %s18, 1
          %p204 = scmp.lt.s32.totalorder %s197, 2
          %s205 = scalar_select %p204, %s197, 2
          %s206 = smul.addr %s203, 3
          %s207 = sadd.s32 %s205, %s206
          %s208 = smul.addr %s207, 4
          %s209 = scalar_lea.vmem %s0, %s208
          %s210 = smul.u32 2, %s19
          %s211 = ssub.s32 3, %s210
          %p212 = scmp.lt.s32.totalorder %s211, 2
          %s213 = scalar_select %p212, %s211, 2
          %s214 = smul.u32 4, %s213
        $region36: #{model_forward.1} parent=31 // pred_fallthru
          _
      $region32: #{model_forward.1} parent=5 // pred_fallthru
        _
      %p215 = scmp.le.s32.totalorder 1, %s11
      %p216 = scmp.lt.s32.totalorder %s11, 5
      %p217 = pnand %p215, %p216
      %p218 = pneg %p217
      // Predicated region
      $region37: #{model_forward.1} parent=5 // pred_check
        _
      $region38: #{model_forward.1} parent=5 // pred_check_branch
        %220 = sbr.rel (%p217) target = $region40
      $region39: #{model_forward.1} parent=5 // pred_region
        %s221 = ssub.s32 %s11, 1
        %s222 = smul.u32 2, %s21
        %s223 = ssub.s32 3, %s222
        %p224 = scmp.lt.s32.totalorder %s223, 2
        %s225 = scalar_select %p224, %s223, 2
        %s226 = smul.u32 4, %s225
        %p227 = scmp.lt.s32.totalorder %s20, 1
        %s228 = scalar_select %p227, %s20, 1
        %p229 = scmp.lt.s32.totalorder %s222, 2
        %s230 = scalar_select %p229, %s222, 2
        %s231 = smul.addr %s228, 3
        %s232 = sadd.s32 %s230, %s231
        %s233 = smul.addr %s232, 4
        %s234 = scalar_lea.vmem %s0, %s233
        %p235 = pneg %p51
        %p236 = pneg %p48
        %p237 = pneg %p72
        %p238 = pneg %p69
        %p239 = pneg %p93
        %p240 = pneg %p90
        %p241 = pneg %p114
        %p242 = pneg %p111
        %p243 = pneg %p135
        %p244 = pneg %p132
        %p245 = pneg %p163
        %p246 = pneg %p160
        %s247 = sand.u32 %s150, 1
        %s248 = sand.u32 %s150, 1
        %s249 = smul.addr %s248, 16
        %s250 = scalar_lea.vmem [#allocation2], %s249
        %s251 = smul.u32 2, %s21
        %s252 = ssub.s32 3, %s251
        %p253 = scmp.lt.s32.totalorder %s252, 2
        %s254 = scalar_select %p253, %s252, 2
        %s255 = smul.u32 4, %s254
        %p256 = scmp.lt.s32.totalorder %s20, 1
        %s257 = scalar_select %p256, %s20, 1
        %p258 = scmp.lt.s32.totalorder %s251, 2
        %s259 = scalar_select %p258, %s251, 2
        %s260 = smul.addr %s257, 3
        %s261 = sadd.s32 %s259, %s260
        %s262 = smul.addr %s261, 4
        %s263 = scalar_lea.vmem %s0, %s262
        %s264 = smul.u32 2, %s21
        %s265 = ssub.s32 3, %s264
        %p266 = scmp.lt.s32.totalorder %s265, 2
        %s267 = scalar_select %p266, %s265, 2
        %s268 = smul.u32 4, %s267
        %s269 = smul.u32 2, %s21
        %s270 = ssub.s32 3, %s269
        %p271 = scmp.lt.s32.totalorder %s270, 2
        %s272 = scalar_select %p271, %s270, 2
        %s273 = smul.u32 8, %s272
        %v274 = vld [vmem:[%s263] sm:$0x77]
        %v275 = vld [vmem:[%s1] sm:$0xff]
        %277 = vset.pattern.permute.xlu0 0
        %278 = vperm.xlu0 %277, %v275
        %v279 = vpop.permute.xlu0 %278
        %v282 = vperm.slane %v274, 0
        %v283 = vperm.slane %v274, 4
        %v286 = vperm.slane %v282, 0
        %v287 = vperm.slane %v283, 0
        %v288 = vmul.f32 %v279, %v286
        %v289 = vmul.f32 %v279, %v287
        %290 = vset.pattern.permute.xlu0 1
        %291 = vperm.xlu0 %290, %v275
        %v292 = vpop.permute.xlu0 %291
        %v294 = vperm.slane %v274, 1
        %v295 = vperm.slane %v274, 5
        %v298 = vperm.slane %v294, 1
        %v299 = vperm.slane %v295, 1
        %v300 = vmul.f32 %v292, %v298
        %v301 = vmul.f32 %v292, %v299
        %v302 = vadd.f32 %v288, %v300
        %v303 = vadd.f32 %v289, %v301
        %304 = vset.pattern.permute.xlu0 2
        %305 = vperm.xlu0 %304, %v275
        %v306 = vpop.permute.xlu0 %305
        %v308 = vperm.slane %v274, 2
        %v309 = vperm.slane %v274, 6
        %v312 = vperm.slane %v308, 2
        %v313 = vperm.slane %v309, 2
        %v314 = vmul.f32 %v306, %v312
        %v315 = vmul.f32 %v306, %v313
        %v316 = vadd.f32 %v302, %v314
        %v317 = vadd.f32 %v303, %v315
        %v318 = vld [vmem:[%s2] sm:$0xff]
        %320 = vset.pattern.permute.xlu0 0
        %321 = vperm.xlu0 %320, %v318
        %v322 = vpop.permute.xlu0 %321
        %v324 = vadd.f32 %v316, %v322
        %v325 = vadd.f32 %v317, %v322
        %v326 = vmul.f32 %v324, 0.5
        %v327 = vmul.f32 %v325, 0.5
        %v328 = vtanh.pop %v326
        %v329 = vtanh.pop %v327
        %v330 = vmul.f32 %v328, 0.5
        %v331 = vmul.f32 %v329, 0.5
        %v332 = vadd.f32 %v330, 0.5
        %v333 = vadd.f32 %v331, 0.5
        %v334 = vld [vmem:[%s3] sm:$0xff]
        %v335 = vld [vmem:[%s4] sm:$0xff]
        %337 = vset.pattern.permute.xlu0 0
        %338 = vperm.xlu0 %337, %v335
        %v339 = vpop.permute.xlu0 %338
        %vm341 = vcmask 64512
        %v343 = vsel %vm341, %v334, 0
        %345 = vmatpush.msra.mxu0 0.0
        %346 = vmatpush.msra.mxu0 0.0
        %347 = vmatpush.msra.mxu0 0.0
        %348 = vmatpush.msra.mxu0 0.0
        %349 = vmatpush.msra.mxu0 0.0
        %350 = vmatpush.msra.mxu0 0.0
        %351 = vmatpush.msra.mxu0 0.0
        %352 = vmatpush.msra.mxu0 0.0
        %353 = vmatpush.msra.mxu0 0.0
        %354 = vmatpush.msra.mxu0 0.0
        %355 = vmatpush.msra.mxu0 0.0
        %356 = vmatpush.msra.mxu0 0.0
        %357 = vmatpush.msra.mxu0 0.0
        %358 = vmatpush.msra.mxu0 0.0
        %359 = vmatpush.msra.mxu0 0.0
        %v360 = vand.u32 %v332, 4294901760
        %361 = vmatpush.msra.mxu0 %v360
        %v362 = vand.u32 %v343, 4294901760
        %v363 = vsub.f32 %v343, %v362
        %v364 = vand.u32 %v363, 4294901760
        %v365 = vsub.f32 %v363, %v364
        %v366 = vand.u32 %v365, 4294901760
        %367 = vmatmul.f32.gmra.mxu0 %v366
        %v368 = vpop.f32.mrf.mxu0
        %v369 = vadd.f32 %v339, %v368
        %370 = vdwg.mxu0
        %371 = vmatpush.msra.mxu0 0.0
        %372 = vmatpush.msra.mxu0 0.0
        %373 = vmatpush.msra.mxu0 0.0
        %374 = vmatpush.msra.mxu0 0.0
        %375 = vmatpush.msra.mxu0 0.0
        %376 = vmatpush.msra.mxu0 0.0
        %377 = vmatpush.msra.mxu0 0.0
        %378 = vmatpush.msra.mxu0 0.0
        %379 = vmatpush.msra.mxu0 0.0
        %380 = vmatpush.msra.mxu0 0.0
        %381 = vmatpush.msra.mxu0 0.0
        %382 = vmatpush.msra.mxu0 0.0
        %383 = vmatpush.msra.mxu0 0.0
        %384 = vmatpush.msra.mxu0 0.0
        %385 = vmatpush.msra.mxu0 0.0
        %v386 = vand.u32 %v332, 4294901760
        %v387 = vsub.f32 %v332, %v386
        %v388 = vand.u32 %v387, 4294901760
        %v389 = vsub.f32 %v387, %v388
        %v390 = vand.u32 %v389, 4294901760
        %391 = vmatpush.msra.mxu0 %v390
        %v392 = vand.u32 %v343, 4294901760
        %393 = vmatmul.f32.gmra.mxu0 %v392
        %v394 = vpop.f32.mrf.mxu0
        %v395 = vadd.f32 %v369, %v394
        %396 = vdwg.mxu0
        %397 = vmatpush.msra.mxu0 0.0
        %398 = vmatpush.msra.mxu0 0.0
        %399 = vmatpush.msra.mxu0 0.0
        %400 = vmatpush.msra.mxu0 0.0
        %401 = vmatpush.msra.mxu0 0.0
        %402 = vmatpush.msra.mxu0 0.0
        %403 = vmatpush.msra.mxu0 0.0
        %404 = vmatpush.msra.mxu0 0.0
        %405 = vmatpush.msra.mxu0 0.0
        %406 = vmatpush.msra.mxu0 0.0
        %407 = vmatpush.msra.mxu0 0.0
        %408 = vmatpush.msra.mxu0 0.0
        %409 = vmatpush.msra.mxu0 0.0
        %410 = vmatpush.msra.mxu0 0.0
        %411 = vmatpush.msra.mxu0 0.0
        %v412 = vand.u32 %v332, 4294901760
        %v413 = vsub.f32 %v332, %v412
        %414 = vmatpush.msra.mxu0 %v413
        %v415 = vand.u32 %v343, 4294901760
        %v416 = vsub.f32 %v343, %v415
        %417 = vmatmul.f32.gmra.mxu0 %v416
        %v418 = vpop.f32.mrf.mxu0
        %v419 = vadd.f32 %v395, %v418
        %420 = vdwg.mxu0
        %421 = vmatpush.msra.mxu0 0.0
        %422 = vmatpush.msra.mxu0 0.0
        %423 = vmatpush.msra.mxu0 0.0
        %424 = vmatpush.msra.mxu0 0.0
        %425 = vmatpush.msra.mxu0 0.0
        %426 = vmatpush.msra.mxu0 0.0
        %427 = vmatpush.msra.mxu0 0.0
        %428 = vmatpush.msra.mxu0 0.0
        %429 = vmatpush.msra.mxu0 0.0
        %430 = vmatpush.msra.mxu0 0.0
        %431 = vmatpush.msra.mxu0 0.0
        %432 = vmatpush.msra.mxu0 0.0
        %433 = vmatpush.msra.mxu0 0.0
        %434 = vmatpush.msra.mxu0 0.0
        %435 = vmatpush.msra.mxu0 0.0
        %v436 = vand.u32 %v332, 4294901760
        %437 = vmatpush.msra.mxu0 %v436
        %v438 = vand.u32 %v343, 4294901760
        %v439 = vsub.f32 %v343, %v438
        %v440 = vand.u32 %v439, 4294901760
        %441 = vmatmul.f32.gmra.mxu0 %v440
        %v442 = vpop.f32.mrf.mxu0
        %v443 = vadd.f32 %v419, %v442
        %444 = vdwg.mxu0
        %445 = vmatpush.msra.mxu0 0.0
        %446 = vmatpush.msra.mxu0 0.0
        %447 = vmatpush.msra.mxu0 0.0
        %448 = vmatpush.msra.mxu0 0.0
        %449 = vmatpush.msra.mxu0 0.0
        %450 = vmatpush.msra.mxu0 0.0
        %451 = vmatpush.msra.mxu0 0.0
        %452 = vmatpush.msra.mxu0 0.0
        %453 = vmatpush.msra.mxu0 0.0
        %454 = vmatpush.msra.mxu0 0.0
        %455 = vmatpush.msra.mxu0 0.0
        %456 = vmatpush.msra.mxu0 0.0
        %457 = vmatpush.msra.mxu0 0.0
        %458 = vmatpush.msra.mxu0 0.0
        %459 = vmatpush.msra.mxu0 0.0
        %v460 = vand.u32 %v332, 4294901760
        %v461 = vsub.f32 %v332, %v460
        %v462 = vand.u32 %v461, 4294901760
        %463 = vmatpush.msra.mxu0 %v462
        %v464 = vand.u32 %v343, 4294901760
        %465 = vmatmul.f32.gmra.mxu0 %v464
        %v466 = vpop.f32.mrf.mxu0
        %v467 = vadd.f32 %v443, %v466
        %468 = vdwg.mxu0
        %469 = vmatpush.msra.mxu0 0.0
        %470 = vmatpush.msra.mxu0 0.0
        %471 = vmatpush.msra.mxu0 0.0
        %472 = vmatpush.msra.mxu0 0.0
        %473 = vmatpush.msra.mxu0 0.0
        %474 = vmatpush.msra.mxu0 0.0
        %475 = vmatpush.msra.mxu0 0.0
        %476 = vmatpush.msra.mxu0 0.0
        %477 = vmatpush.msra.mxu0 0.0
        %478 = vmatpush.msra.mxu0 0.0
        %479 = vmatpush.msra.mxu0 0.0
        %480 = vmatpush.msra.mxu0 0.0
        %481 = vmatpush.msra.mxu0 0.0
        %482 = vmatpush.msra.mxu0 0.0
        %483 = vmatpush.msra.mxu0 0.0
        %v484 = vand.u32 %v332, 4294901760
        %485 = vmatpush.msra.mxu0 %v484
        %v486 = vand.u32 %v343, 4294901760
        %487 = vmatmul.f32.gmra.mxu0 %v486
        %v488 = vpop.f32.mrf.mxu0
        %v489 = vadd.f32 %v467, %v488
        %490 = vdwg.mxu0
        %491 = vmatpush.msra.mxu0 0.0
        %492 = vmatpush.msra.mxu0 0.0
        %493 = vmatpush.msra.mxu0 0.0
        %494 = vmatpush.msra.mxu0 0.0
        %495 = vmatpush.msra.mxu0 0.0
        %496 = vmatpush.msra.mxu0 0.0
        %497 = vmatpush.msra.mxu0 0.0
        %498 = vmatpush.msra.mxu0 0.0
        %499 = vmatpush.msra.mxu0 0.0
        %500 = vmatpush.msra.mxu0 0.0
        %501 = vmatpush.msra.mxu0 0.0
        %502 = vmatpush.msra.mxu0 0.0
        %503 = vmatpush.msra.mxu0 0.0
        %504 = vmatpush.msra.mxu0 0.0
        %505 = vmatpush.msra.mxu0 0.0
        %v506 = vand.u32 %v333, 4294901760
        %507 = vmatpush.msra.mxu0 %v506
        %v508 = vand.u32 %v343, 4294901760
        %v509 = vsub.f32 %v343, %v508
        %v510 = vand.u32 %v509, 4294901760
        %v511 = vsub.f32 %v509, %v510
        %v512 = vand.u32 %v511, 4294901760
        %513 = vmatmul.f32.gmra.mxu0 %v512
        %v514 = vpop.f32.mrf.mxu0
        %v515 = vadd.f32 %v339, %v514
        %516 = vdwg.mxu0
        %517 = vmatpush.msra.mxu0 0.0
        %518 = vmatpush.msra.mxu0 0.0
        %519 = vmatpush.msra.mxu0 0.0
        %520 = vmatpush.msra.mxu0 0.0
        %521 = vmatpush.msra.mxu0 0.0
        %522 = vmatpush.msra.mxu0 0.0
        %523 = vmatpush.msra.mxu0 0.0
        %524 = vmatpush.msra.mxu0 0.0
        %525 = vmatpush.msra.mxu0 0.0
        %526 = vmatpush.msra.mxu0 0.0
        %527 = vmatpush.msra.mxu0 0.0
        %528 = vmatpush.msra.mxu0 0.0
        %529 = vmatpush.msra.mxu0 0.0
        %530 = vmatpush.msra.mxu0 0.0
        %531 = vmatpush.msra.mxu0 0.0
        %v532 = vand.u32 %v333, 4294901760
        %v533 = vsub.f32 %v333, %v532
        %v534 = vand.u32 %v533, 4294901760
        %v535 = vsub.f32 %v533, %v534
        %v536 = vand.u32 %v535, 4294901760
        %537 = vmatpush.msra.mxu0 %v536
        %v538 = vand.u32 %v343, 4294901760
        %539 = vmatmul.f32.gmra.mxu0 %v538
        %v540 = vpop.f32.mrf.mxu0
        %v541 = vadd.f32 %v515, %v540
        %542 = vdwg.mxu0
        %543 = vmatpush.msra.mxu0 0.0
        %544 = vmatpush.msra.mxu0 0.0
        %545 = vmatpush.msra.mxu0 0.0
        %546 = vmatpush.msra.mxu0 0.0
        %547 = vmatpush.msra.mxu0 0.0
        %548 = vmatpush.msra.mxu0 0.0
        %549 = vmatpush.msra.mxu0 0.0
        %550 = vmatpush.msra.mxu0 0.0
        %551 = vmatpush.msra.mxu0 0.0
        %552 = vmatpush.msra.mxu0 0.0
        %553 = vmatpush.msra.mxu0 0.0
        %554 = vmatpush.msra.mxu0 0.0
        %555 = vmatpush.msra.mxu0 0.0
        %556 = vmatpush.msra.mxu0 0.0
        %557 = vmatpush.msra.mxu0 0.0
        %v558 = vand.u32 %v333, 4294901760
        %v559 = vsub.f32 %v333, %v558
        %560 = vmatpush.msra.mxu0 %v559
        %v561 = vand.u32 %v343, 4294901760
        %v562 = vsub.f32 %v343, %v561
        %563 = vmatmul.f32.gmra.mxu0 %v562
        %v564 = vpop.f32.mrf.mxu0
        %v565 = vadd.f32 %v541, %v564
        %566 = vdwg.mxu0
        %567 = vmatpush.msra.mxu0 0.0
        %568 = vmatpush.msra.mxu0 0.0
        %569 = vmatpush.msra.mxu0 0.0
        %570 = vmatpush.msra.mxu0 0.0
        %571 = vmatpush.msra.mxu0 0.0
        %572 = vmatpush.msra.mxu0 0.0
        %573 = vmatpush.msra.mxu0 0.0
        %574 = vmatpush.msra.mxu0 0.0
        %575 = vmatpush.msra.mxu0 0.0
        %576 = vmatpush.msra.mxu0 0.0
        %577 = vmatpush.msra.mxu0 0.0
        %578 = vmatpush.msra.mxu0 0.0
        %579 = vmatpush.msra.mxu0 0.0
        %580 = vmatpush.msra.mxu0 0.0
        %581 = vmatpush.msra.mxu0 0.0
        %v582 = vand.u32 %v333, 4294901760
        %583 = vmatpush.msra.mxu0 %v582
        %v584 = vand.u32 %v343, 4294901760
        %v585 = vsub.f32 %v343, %v584
        %v586 = vand.u32 %v585, 4294901760
        %587 = vmatmul.f32.gmra.mxu0 %v586
        %v588 = vpop.f32.mrf.mxu0
        %v589 = vadd.f32 %v565, %v588
        %590 = vdwg.mxu0
        %591 = vmatpush.msra.mxu0 0.0
        %592 = vmatpush.msra.mxu0 0.0
        %593 = vmatpush.msra.mxu0 0.0
        %594 = vmatpush.msra.mxu0 0.0
        %595 = vmatpush.msra.mxu0 0.0
        %596 = vmatpush.msra.mxu0 0.0
        %597 = vmatpush.msra.mxu0 0.0
        %598 = vmatpush.msra.mxu0 0.0
        %599 = vmatpush.msra.mxu0 0.0
        %600 = vmatpush.msra.mxu0 0.0
        %601 = vmatpush.msra.mxu0 0.0
        %602 = vmatpush.msra.mxu0 0.0
        %603 = vmatpush.msra.mxu0 0.0
        %604 = vmatpush.msra.mxu0 0.0
        %605 = vmatpush.msra.mxu0 0.0
        %v606 = vand.u32 %v333, 4294901760
        %v607 = vsub.f32 %v333, %v606
        %v608 = vand.u32 %v607, 4294901760
        %609 = vmatpush.msra.mxu0 %v608
        %v610 = vand.u32 %v343, 4294901760
        %611 = vmatmul.f32.gmra.mxu0 %v610
        %v612 = vpop.f32.mrf.mxu0
        %v613 = vadd.f32 %v589, %v612
        %614 = vdwg.mxu0
        %615 = vmatpush.msra.mxu0 0.0
        %616 = vmatpush.msra.mxu0 0.0
        %617 = vmatpush.msra.mxu0 0.0
        %618 = vmatpush.msra.mxu0 0.0
        %619 = vmatpush.msra.mxu0 0.0
        %620 = vmatpush.msra.mxu0 0.0
        %621 = vmatpush.msra.mxu0 0.0
        %622 = vmatpush.msra.mxu0 0.0
        %623 = vmatpush.msra.mxu0 0.0
        %624 = vmatpush.msra.mxu0 0.0
        %625 = vmatpush.msra.mxu0 0.0
        %626 = vmatpush.msra.mxu0 0.0
        %627 = vmatpush.msra.mxu0 0.0
        %628 = vmatpush.msra.mxu0 0.0
        %629 = vmatpush.msra.mxu0 0.0
        %v630 = vand.u32 %v333, 4294901760
        %631 = vmatpush.msra.mxu0 %v630
        %v632 = vand.u32 %v343, 4294901760
        %633 = vmatmul.f32.gmra.mxu0 %v632
        %v634 = vpop.f32.mrf.mxu0
        %v635 = vadd.f32 %v613, %v634
        %636 = vdwg.mxu0
        %v637 = vmul.f32 %v489, 0.5
        %v638 = vmul.f32 %v635, 0.5
        %v639 = vtanh.pop %v637
        %v640 = vtanh.pop %v638
        %v641 = vmul.f32 %v639, 0.5
        %v642 = vmul.f32 %v640, 0.5
        %v643 = vadd.f32 %v641, 0.5
        %v644 = vadd.f32 %v642, 0.5
        %v645 = vmul.f32 %v332, %v643
        %v646 = vmul.f32 %v333, %v644
        %647 = vst [vmem:[%s250] sm:$0xff] %v645
        %648 = vst [vmem:[%s250 + $0x8] sm:$0xff] %v646
        %s649 = sand.u32 %s150, 1
        %s650 = sand.u32 %s150, 1
        %s651 = smul.addr %s650, 16
        %s652 = scalar_lea.vmem [#allocation2], %s651
        // Predicated region
        $region41: #{model_forward.1} parent=39 // pred_check
          %p653 = pneg %p160
        $region42: #{model_forward.1} parent=39 // pred_check_branch
          %655 = sbr.rel (%p653) target = $region44
        $region43: #{model_forward.1} parent=39 // pred_region
          %s656 = smul.u32 2, %s21
          %s657 = ssub.s32 3, %s656
          %p658 = scmp.lt.s32.totalorder %s657, 2
          %s659 = scalar_select %p658, %s657, 2
          %s660 = smul.u32 8, %s659
          %p661 = scmp.ne.s32.totalorder 0, %s660
          %s662 = smul.addr %s20, 3
          %s663 = sadd.s32 %s656, %s662
          %s664 = smul.addr %s663, 8
          %s665 = scalar_lea.vmem %s5, %s664
          %s666 = smul.u32 %s659, 8
          // Predicated region
          $region45: #{model_forward.1} parent=43 // pred_check
            %p667 = pneg %p661
          $region46: #{model_forward.1} parent=43 // pred_check_branch
            %669 = sbr.rel (%p667) target = $region48
          $region47: #{model_forward.1} parent=43 // pred_region
            %p670 = scmp.lt.u32.totalorder %s666, 8
            %p671 = pneg %p670
            // Predicated region
            $region49: #{model_forward.1} parent=47 // pred_check
              _
            $region50: #{model_forward.1} parent=47 // pred_check_branch
              %673 = sbr.rel (%p670) target = $region52
            $region51: #{model_forward.1} parent=47 // pred_region
              %s689 = sand.u32 %s666, 7
              %p690 = scmp.eq.s32.totalorder %s689, 0
              // Predicated region
              $region64: #{model_forward.1} parent=51 // pred_check
                %p691 = pneg %p690
              $region65: #{model_forward.1} parent=51 // pred_check_branch
                %693 = sbr.rel (%p691) target = $region67
              $region66: #{model_forward.1} parent=51 // pred_region
                %s694 = sshrl.u32 %s666, 3
                %s695 = sshrl.u32 %s694, 5
                // While loop
                $region68: #{model_forward.1} parent=66 // loop_pre_header
                  _
                $region69: #{model_forward.1} parent=66 // loop_header
                  %s697 = sphi 0, %s699
                  %p698 = scmp.ge.s32.totalorder %s697, %s695
                  %s702 = sphi 0, %s771
                  %s703 = sphi %s652, %s774
                  %s704 = sphi %s665, %s775
                $region70: #{model_forward.1} parent=66 // loop_header_branch
                  %701 = sbr.rel (%p698) target = $region74
                $region71: #{model_forward.1} parent=66 // loop_body
                  %v705 = vld [vmem:[%s703] sm:$0xff]
                  %706 = vst [vmem:[%s704] sm:$0xff] %v705
                  %v707 = vld [vmem:[%s703 + $0x8] sm:$0xff]
                  %708 = vst [vmem:[%s704 + $0x8] sm:$0xff] %v707
                  %v709 = vld [vmem:[%s703 + $0x10] sm:$0xff]
                  %710 = vst [vmem:[%s704 + $0x10] sm:$0xff] %v709
                  %v711 = vld [vmem:[%s703 + $0x18] sm:$0xff]
                  %712 = vst [vmem:[%s704 + $0x18] sm:$0xff] %v711
                  %v713 = vld [vmem:[%s703 + $0x20] sm:$0xff]
                  %714 = vst [vmem:[%s704 + $0x20] sm:$0xff] %v713
                  %v715 = vld [vmem:[%s703 + $0x28] sm:$0xff]
                  %716 = vst [vmem:[%s704 + $0x28] sm:$0xff] %v715
                  %v717 = vld [vmem:[%s703 + $0x30] sm:$0xff]
                  %718 = vst [vmem:[%s704 + $0x30] sm:$0xff] %v717
                  %v719 = vld [vmem:[%s703 + $0x38] sm:$0xff]
                  %720 = vst [vmem:[%s704 + $0x38] sm:$0xff] %v719
                  %v721 = vld [vmem:[%s703 + $0x40] sm:$0xff]
                  %722 = vst [vmem:[%s704 + $0x40] sm:$0xff] %v721
                  %v723 = vld [vmem:[%s703 + $0x48] sm:$0xff]
                  %724 = vst [vmem:[%s704 + $0x48] sm:$0xff] %v723
                  %v725 = vld [vmem:[%s703 + $0x50] sm:$0xff]
                  %726 = vst [vmem:[%s704 + $0x50] sm:$0xff] %v725
                  %v727 = vld [vmem:[%s703 + $0x58] sm:$0xff]
                  %728 = vst [vmem:[%s704 + $0x58] sm:$0xff] %v727
                  %v729 = vld [vmem:[%s703 + $0x60] sm:$0xff]
                  %730 = vst [vmem:[%s704 + $0x60] sm:$0xff] %v729
                  %v731 = vld [vmem:[%s703 + $0x68] sm:$0xff]
                  %732 = vst [vmem:[%s704 + $0x68] sm:$0xff] %v731
                  %v733 = vld [vmem:[%s703 + $0x70] sm:$0xff]
                  %734 = vst [vmem:[%s704 + $0x70] sm:$0xff] %v733
                  %v735 = vld [vmem:[%s703 + $0x78] sm:$0xff]
                  %736 = vst [vmem:[%s704 + $0x78] sm:$0xff] %v735
                  %v737 = vld [vmem:[%s703 + $0x80] sm:$0xff]
                  %738 = vst [vmem:[%s704 + $0x80] sm:$0xff] %v737
                  %v739 = vld [vmem:[%s703 + $0x88] sm:$0xff]
                  %740 = vst [vmem:[%s704 + $0x88] sm:$0xff] %v739
                  %v741 = vld [vmem:[%s703 + $0x90] sm:$0xff]
                  %742 = vst [vmem:[%s704 + $0x90] sm:$0xff] %v741
                  %v743 = vld [vmem:[%s703 + $0x98] sm:$0xff]
                  %744 = vst [vmem:[%s704 + $0x98] sm:$0xff] %v743
                  %v745 = vld [vmem:[%s703 + $0xa0] sm:$0xff]
                  %746 = vst [vmem:[%s704 + $0xa0] sm:$0xff] %v745
                  %v747 = vld [vmem:[%s703 + $0xa8] sm:$0xff]
                  %748 = vst [vmem:[%s704 + $0xa8] sm:$0xff] %v747
                  %v749 = vld [vmem:[%s703 + $0xb0] sm:$0xff]
                  %750 = vst [vmem:[%s704 + $0xb0] sm:$0xff] %v749
                  %v751 = vld [vmem:[%s703 + $0xb8] sm:$0xff]
                  %752 = vst [vmem:[%s704 + $0xb8] sm:$0xff] %v751
                  %v753 = vld [vmem:[%s703 + $0xc0] sm:$0xff]
                  %754 = vst [vmem:[%s704 + $0xc0] sm:$0xff] %v753
                  %v755 = vld [vmem:[%s703 + $0xc8] sm:$0xff]
                  %756 = vst [vmem:[%s704 + $0xc8] sm:$0xff] %v755
                  %v757 = vld [vmem:[%s703 + $0xd0] sm:$0xff]
                  %758 = vst [vmem:[%s704 + $0xd0] sm:$0xff] %v757
                  %v759 = vld [vmem:[%s703 + $0xd8] sm:$0xff]
                  %760 = vst [vmem:[%s704 + $0xd8] sm:$0xff] %v759
                  %v761 = vld [vmem:[%s703 + $0xe0] sm:$0xff]
                  %762 = vst [vmem:[%s704 + $0xe0] sm:$0xff] %v761
                  %v763 = vld [vmem:[%s703 + $0xe8] sm:$0xff]
                  %764 = vst [vmem:[%s704 + $0xe8] sm:$0xff] %v763
                  %v765 = vld [vmem:[%s703 + $0xf0] sm:$0xff]
                  %766 = vst [vmem:[%s704 + $0xf0] sm:$0xff] %v765
                  %v767 = vld [vmem:[%s703 + $0xf8] sm:$0xff]
                  %768 = vst [vmem:[%s704 + $0xf8] sm:$0xff] %v767
                  %s769 = sadd.s32 1, %s702
                  %p770 = scmp.ge.s32.totalorder %s769, %s695
                  %s771 = scalar_select %p770, 0, %s769
                  %s772 = smul.u32 %s771, 256
                  %s773 = smul.u32 %s771, 256
                  %s774 = scalar_lea.vmem %s652, %s772 [#allocation2]
                  %s775 = scalar_lea.vmem %s665, %s773
                $region72: #{model_forward.1} parent=66 // loop_footer
                  %s699 = sadd.s32 %s697, 1
                $region73: #{model_forward.1} parent=66 // loop_footer_branch
                  %696 = sbr.rel target = $region69
                $region74: #{model_forward.1} parent=66 // loop_exit
                  _
                %s776 = sshrl.u32 %s694, 5
                %s777 = sand.u32 %s694, 31
                %s778 = smul.u32 %s776, 32
                %s779 = smul.u32 8, %s778
                %s780 = scalar_lea.vmem %s652, %s779 [#allocation2]
                %s781 = smul.u32 8, %s778
                %s782 = scalar_lea.vmem %s665, %s781
                // While loop
                $region75: #{model_forward.1} parent=66 // loop_pre_header
                  _
                $region76: #{model_forward.1} parent=66 // loop_header
                  %s784 = sphi 0, %s786
                  %p785 = scmp.ge.s32.totalorder %s784, %s777
                  %s789 = sphi 0, %s796
                  %s790 = sphi %s780, %s799
                  %s791 = sphi %s782, %s800
                $region77: #{model_forward.1} parent=66 // loop_header_branch
                  %788 = sbr.rel (%p785) target = $region81
                $region78: #{model_forward.1} parent=66 // loop_body
                  %v792 = vld [vmem:[%s790] sm:$0xff]
                  %793 = vst [vmem:[%s791] sm:$0xff] %v792
                  %s794 = sadd.s32 1, %s789
                  %p795 = scmp.ge.s32.totalorder %s794, %s777
                  %s796 = scalar_select %p795, 0, %s794
                  %s797 = smul.u32 %s796, 8
                  %s798 = smul.u32 %s796, 8
                  %s799 = scalar_lea.vmem %s780, %s797 [#allocation2]
                  %s800 = scalar_lea.vmem %s782, %s798
                $region79: #{model_forward.1} parent=66 // loop_footer
                  %s786 = sadd.s32 %s784, 1
                $region80: #{model_forward.1} parent=66 // loop_footer_branch
                  %783 = sbr.rel target = $region76
                $region81: #{model_forward.1} parent=66 // loop_exit
                  _
              $region67: #{model_forward.1} parent=51 // pred_fallthru
                _
              %p801 = pneg %p690
              // Predicated region
              $region82: #{model_forward.1} parent=51 // pred_check
                _
              $region83: #{model_forward.1} parent=51 // pred_check_branch
                %803 = sbr.rel (%p690) target = $region85
              $region84: #{model_forward.1} parent=51 // pred_region
                %s804 = sand.u32 %s666, 7
                %s805 = ssub.s32 %s666, %s804
                %s806 = scalar_lea.vmem %s652, %s805 [#allocation2]
                %s807 = ssub.s32 %s666, %s804
                %s808 = scalar_lea.vmem %s665, %s807
                %s809 = sshrl.u32 %s666, 3
                %s810 = sshrl.u32 %s809, 5
                // While loop
                $region86: #{model_forward.1} parent=84 // loop_pre_header
                  _
                $region87: #{model_forward.1} parent=84 // loop_header
                  %s812 = sphi 0, %s814
                  %p813 = scmp.ge.s32.totalorder %s812, %s810
                  %s817 = sphi 0, %s886
                  %s818 = sphi %s652, %s889
                  %s819 = sphi %s665, %s890
                $region88: #{model_forward.1} parent=84 // loop_header_branch
                  %816 = sbr.rel (%p813) target = $region92
                $region89: #{model_forward.1} parent=84 // loop_body
                  %v820 = vld [vmem:[%s818] sm:$0xff]
                  %821 = vst [vmem:[%s819] sm:$0xff] %v820
                  %v822 = vld [vmem:[%s818 + $0x8] sm:$0xff]
                  %823 = vst [vmem:[%s819 + $0x8] sm:$0xff] %v822
                  %v824 = vld [vmem:[%s818 + $0x10] sm:$0xff]
                  %825 = vst [vmem:[%s819 + $0x10] sm:$0xff] %v824
                  %v826 = vld [vmem:[%s818 + $0x18] sm:$0xff]
                  %827 = vst [vmem:[%s819 + $0x18] sm:$0xff] %v826
                  %v828 = vld [vmem:[%s818 + $0x20] sm:$0xff]
                  %829 = vst [vmem:[%s819 + $0x20] sm:$0xff] %v828
                  %v830 = vld [vmem:[%s818 + $0x28] sm:$0xff]
                  %831 = vst [vmem:[%s819 + $0x28] sm:$0xff] %v830
                  %v832 = vld [vmem:[%s818 + $0x30] sm:$0xff]
                  %833 = vst [vmem:[%s819 + $0x30] sm:$0xff] %v832
                  %v834 = vld [vmem:[%s818 + $0x38] sm:$0xff]
                  %835 = vst [vmem:[%s819 + $0x38] sm:$0xff] %v834
                  %v836 = vld [vmem:[%s818 + $0x40] sm:$0xff]
                  %837 = vst [vmem:[%s819 + $0x40] sm:$0xff] %v836
                  %v838 = vld [vmem:[%s818 + $0x48] sm:$0xff]
                  %839 = vst [vmem:[%s819 + $0x48] sm:$0xff] %v838
                  %v840 = vld [vmem:[%s818 + $0x50] sm:$0xff]
                  %841 = vst [vmem:[%s819 + $0x50] sm:$0xff] %v840
                  %v842 = vld [vmem:[%s818 + $0x58] sm:$0xff]
                  %843 = vst [vmem:[%s819 + $0x58] sm:$0xff] %v842
                  %v844 = vld [vmem:[%s818 + $0x60] sm:$0xff]
                  %845 = vst [vmem:[%s819 + $0x60] sm:$0xff] %v844
                  %v846 = vld [vmem:[%s818 + $0x68] sm:$0xff]
                  %847 = vst [vmem:[%s819 + $0x68] sm:$0xff] %v846
                  %v848 = vld [vmem:[%s818 + $0x70] sm:$0xff]
                  %849 = vst [vmem:[%s819 + $0x70] sm:$0xff] %v848
                  %v850 = vld [vmem:[%s818 + $0x78] sm:$0xff]
                  %851 = vst [vmem:[%s819 + $0x78] sm:$0xff] %v850
                  %v852 = vld [vmem:[%s818 + $0x80] sm:$0xff]
                  %853 = vst [vmem:[%s819 + $0x80] sm:$0xff] %v852
                  %v854 = vld [vmem:[%s818 + $0x88] sm:$0xff]
                  %855 = vst [vmem:[%s819 + $0x88] sm:$0xff] %v854
                  %v856 = vld [vmem:[%s818 + $0x90] sm:$0xff]
                  %857 = vst [vmem:[%s819 + $0x90] sm:$0xff] %v856
                  %v858 = vld [vmem:[%s818 + $0x98] sm:$0xff]
                  %859 = vst [vmem:[%s819 + $0x98] sm:$0xff] %v858
                  %v860 = vld [vmem:[%s818 + $0xa0] sm:$0xff]
                  %861 = vst [vmem:[%s819 + $0xa0] sm:$0xff] %v860
                  %v862 = vld [vmem:[%s818 + $0xa8] sm:$0xff]
                  %863 = vst [vmem:[%s819 + $0xa8] sm:$0xff] %v862
                  %v864 = vld [vmem:[%s818 + $0xb0] sm:$0xff]
                  %865 = vst [vmem:[%s819 + $0xb0] sm:$0xff] %v864
                  %v866 = vld [vmem:[%s818 + $0xb8] sm:$0xff]
                  %867 = vst [vmem:[%s819 + $0xb8] sm:$0xff] %v866
                  %v868 = vld [vmem:[%s818 + $0xc0] sm:$0xff]
                  %869 = vst [vmem:[%s819 + $0xc0] sm:$0xff] %v868
                  %v870 = vld [vmem:[%s818 + $0xc8] sm:$0xff]
                  %871 = vst [vmem:[%s819 + $0xc8] sm:$0xff] %v870
                  %v872 = vld [vmem:[%s818 + $0xd0] sm:$0xff]
                  %873 = vst [vmem:[%s819 + $0xd0] sm:$0xff] %v872
                  %v874 = vld [vmem:[%s818 + $0xd8] sm:$0xff]
                  %875 = vst [vmem:[%s819 + $0xd8] sm:$0xff] %v874
                  %v876 = vld [vmem:[%s818 + $0xe0] sm:$0xff]
                  %877 = vst [vmem:[%s819 + $0xe0] sm:$0xff] %v876
                  %v878 = vld [vmem:[%s818 + $0xe8] sm:$0xff]
                  %879 = vst [vmem:[%s819 + $0xe8] sm:$0xff] %v878
                  %v880 = vld [vmem:[%s818 + $0xf0] sm:$0xff]
                  %881 = vst [vmem:[%s819 + $0xf0] sm:$0xff] %v880
                  %v882 = vld [vmem:[%s818 + $0xf8] sm:$0xff]
                  %883 = vst [vmem:[%s819 + $0xf8] sm:$0xff] %v882
                  %s884 = sadd.s32 1, %s817
                  %p885 = scmp.ge.s32.totalorder %s884, %s810
                  %s886 = scalar_select %p885, 0, %s884
                  %s887 = smul.u32 %s886, 256
                  %s888 = smul.u32 %s886, 256
                  %s889 = scalar_lea.vmem %s652, %s887 [#allocation2]
                  %s890 = scalar_lea.vmem %s665, %s888
                $region90: #{model_forward.1} parent=84 // loop_footer
                  %s814 = sadd.s32 %s812, 1
                $region91: #{model_forward.1} parent=84 // loop_footer_branch
                  %811 = sbr.rel target = $region87
                $region92: #{model_forward.1} parent=84 // loop_exit
                  _
                %s891 = sshrl.u32 %s809, 5
                %s892 = sand.u32 %s809, 31
                %s893 = smul.u32 %s891, 32
                %s894 = smul.u32 8, %s893
                %s895 = scalar_lea.vmem %s652, %s894 [#allocation2]
                %s896 = smul.u32 8, %s893
                %s897 = scalar_lea.vmem %s665, %s896
                // While loop
                $region93: #{model_forward.1} parent=84 // loop_pre_header
                  _
                $region94: #{model_forward.1} parent=84 // loop_header
                  %s899 = sphi 0, %s901
                  %p900 = scmp.ge.s32.totalorder %s899, %s892
                  %s904 = sphi 0, %s911
                  %s905 = sphi %s895, %s914
                  %s906 = sphi %s897, %s915
                $region95: #{model_forward.1} parent=84 // loop_header_branch
                  %903 = sbr.rel (%p900) target = $region99
                $region96: #{model_forward.1} parent=84 // loop_body
                  %v907 = vld [vmem:[%s905] sm:$0xff]
                  %908 = vst [vmem:[%s906] sm:$0xff] %v907
                  %s909 = sadd.s32 1, %s904
                  %p910 = scmp.ge.s32.totalorder %s909, %s892
                  %s911 = scalar_select %p910, 0, %s909
                  %s912 = smul.u32 %s911, 8
                  %s913 = smul.u32 %s911, 8
                  %s914 = scalar_lea.vmem %s895, %s912 [#allocation2]
                  %s915 = scalar_lea.vmem %s897, %s913
                $region97: #{model_forward.1} parent=84 // loop_footer
                  %s901 = sadd.s32 %s899, 1
                $region98: #{model_forward.1} parent=84 // loop_footer_branch
                  %898 = sbr.rel target = $region94
                $region99: #{model_forward.1} parent=84 // loop_exit
                  _
                %s916 = sshll.u32 1, %s804
                %s917 = ssub.s32 %s916, 1
                loop: start=0, step=1, limit=1
                $region100: #{model_forward.1} parent=84 // loop_pre_header
                  _
                $region101: #{model_forward.1} parent=84 // loop_header
                  %s919 = sphi 0, %s923
                  %p920 = scmp.ge.s32.totalorder %s919, 1
                  %s924 = sphi %s806, %s806
                  %s925 = sphi %s808, %s808
                $region102: #{model_forward.1} parent=84 // loop_header_branch
                  %922 = sbr.rel (%p920) target = $region106
                $region103: #{model_forward.1} parent=84 // loop_body
                  %v926 = vld [vmem:[%s924] sm:%s917]
                  %927 = vst [vmem:[%s925] sm:%s917] %v926
                $region104: #{model_forward.1} parent=84 // loop_footer
                  %s923 = sadd.s32 1, %s919
                $region105: #{model_forward.1} parent=84 // loop_footer_branch
                  %918 = sbr.rel target = $region101
                $region106: #{model_forward.1} parent=84 // loop_exit
                  _
              $region85: #{model_forward.1} parent=51 // pred_fallthru
                _
            $region52: #{model_forward.1} parent=47 // pred_fallthru
              _
            // Predicated region
            $region53: #{model_forward.1} parent=47 // pred_check
              %p674 = pneg %p670
            $region54: #{model_forward.1} parent=47 // pred_check_branch
              %676 = sbr.rel (%p674) target = $region56
            $region55: #{model_forward.1} parent=47 // pred_region
              %s677 = sshll.u32 1, %s666
              %s678 = ssub.s32 %s677, 1
              loop: start=0, step=1, limit=1
              $region57: #{model_forward.1} parent=55 // loop_pre_header
                _
              $region58: #{model_forward.1} parent=55 // loop_header
                %s680 = sphi 0, %s684
                %p681 = scmp.ge.s32.totalorder %s680, 1
                %s685 = sphi %s652, %s652
                %s686 = sphi %s665, %s665
              $region59: #{model_forward.1} parent=55 // loop_header_branch
                %683 = sbr.rel (%p681) target = $region63
              $region60: #{model_forward.1} parent=55 // loop_body
                %v687 = vld [vmem:[%s685] sm:%s678]
                %688 = vst [vmem:[%s686] sm:%s678] %v687
              $region61: #{model_forward.1} parent=55 // loop_footer
                %s684 = sadd.s32 1, %s680
              $region62: #{model_forward.1} parent=55 // loop_footer_branch
                %679 = sbr.rel target = $region58
              $region63: #{model_forward.1} parent=55 // loop_exit
                _
            $region56: #{model_forward.1} parent=47 // pred_fallthru
              _
          $region48: #{model_forward.1} parent=43 // pred_fallthru
            _
          %928 = vnop
        $region44: #{model_forward.1} parent=39 // pred_fallthru
          _
      $region40: #{model_forward.1} parent=5 // pred_fallthru
        _
      %p929 = scmp.le.s32.totalorder 2, %s11
      // Predicated region
      $region107: #{model_forward.1} parent=5 // pred_check
        %p930 = pneg %p929
      $region108: #{model_forward.1} parent=5 // pred_check_branch
        %932 = sbr.rel (%p930) target = $region110
      $region109: #{model_forward.1} parent=5 // pred_region
        %s933 = ssub.s32 %s11, 2
        // Predicated region
        $region111: #{model_forward.1} parent=109 // pred_check
          %p934 = pneg %p166
        $region112: #{model_forward.1} parent=109 // pred_check_branch
          %936 = sbr.rel (%p934) target = $region114
        $region113: #{model_forward.1} parent=109 // pred_region
          %s937 = sand.u32 %s151, 1
          %s938 = sand.u32 %s151, 1
          %s939 = smul.addr %s938, 16
          %s940 = scalar_lea.vmem [#allocation2], %s939
        $region114: #{model_forward.1} parent=109 // pred_fallthru
          _
      $region110: #{model_forward.1} parent=5 // pred_fallthru
        _
    $region6: #{model_forward.1} parent=1 // loop_footer
      %s15 = sadd.s32 1, %s11
    $region7: #{model_forward.1} parent=1 // loop_footer_branch
      %10 = sbr.rel target = $region3
    $region8: #{model_forward.1} parent=1 // loop_exit
      _

</llo_original>
